<compile_context>
chip_gen: v7x
topology: tpu7x:2x2x1
jax: 0.10.0
libtpu: 0.0.40
codegen_flags: <defaults>
</compile_context>

<pallas_src>
import functools

import jax
import jax.numpy as jnp
from jax.experimental import pallas as pl
from jax.experimental.pallas import tpu as pltpu


LANE = 128        # hidden-feature padding (keeps intermediate activations lane-dense)
SUBLANE = 8       # minimum batch padding
BATCH_TILE = 512  # rows per grid step in the tiled path
_MIB = 1 << 20


def _round_up(n, m):
    return ((n + m - 1) // m) * m


def _default_compute_dtype():
    """bf16 matmuls on v6e / v7x (bf16-native MXU+VPU); f32 elsewhere (v5e has no bf16 VPU)."""
    try:
        kind = jax.devices()[0].device_kind.lower()
    except Exception:
        return jnp.float32
    if ("v6" in kind) or ("v7" in kind) or ("7x" in kind):
        return jnp.bfloat16
    return jnp.float32


def _make_fused_mlp_kernel(num_layers, compute_dtype):
    """Kernel: refs = (x, w0, b0, w1, b1, ..., out). Unrolled Linear+ReLU chain."""

    def kernel(*refs):
        x_ref = refs[0]
        o_ref = refs[-1]
        h = x_ref[...]
        for i in range(num_layers):
            w_ref = refs[1 + 2 * i]
            b_ref = refs[2 + 2 * i]
            # MXU matmul with f32 accumulation; bias-add + ReLU stay on the f32 VPU path.
            acc = jnp.dot(h, w_ref[...], preferred_element_type=jnp.float32)
            h = jnp.maximum(acc + b_ref[...], 0.0)
            if i + 1 < num_layers:
                h = h.astype(compute_dtype)
        o_ref[...] = h.astype(o_ref.dtype)

    return kernel


def _vmem_limit_bytes(flat_params, b_block, din, dout, widest_pad):
    """Rough VMEM budget: double-buffered params + x/out tiles + f32 activation slabs.

    Clamped to [32 MiB, 48 MiB]: 32 MiB raises v5e's 16 MiB scoped default (physical
    128 MiB), 48 MiB stays safely under v7x's 64 MiB physical per-TC VMEM.
    """
    w_bytes = sum(int(p.size) * p.dtype.itemsize for p in flat_params) * 2
    io_bytes = 2 * b_block * (din * 4 + dout * 4)
    act_bytes = 2 * b_block * widest_pad * 4
    need = 2 * (w_bytes + io_bytes + act_bytes)
    return int(min(max(need, 32 * _MIB), 48 * _MIB))


def _forward(x, flat_params, *, num_layers, out_dim, compute_dtype, widest_pad):
    """Full forward pass: pad batch -> single fused-MLP pallas_call -> un-pad slice.

    Intended to run entirely under jax.jit (shapes are static at trace time).
    """
    B, din = x.shape
    kernel = _make_fused_mlp_kernel(num_layers, compute_dtype)
    out_dtype = jnp.float32

    # Bucket the padded batch (powers of two) so the set of compiled kernel shapes
    # stays small even when the caller's batch size varies (replay-buffer RL).
    b_bucket = max(SUBLANE, pl.next_power_of_2(B))

    if b_bucket <= BATCH_TILE:
        # ---- small path: no grid, everything VMEM-resident, one kernel invocation ----
        b_pad = b_bucket
        x_pad = jnp.zeros((b_pad, din), compute_dtype).at[:B, :].set(
            x.astype(compute_dtype))
        n_in = 1 + len(flat_params)
        vmem = _vmem_limit_bytes(flat_params, b_pad, din, out_dim, widest_pad)
        y_pad = pl.pallas_call(
            kernel,
            out_shape=jax.ShapeDtypeStruct((b_pad, out_dim), out_dtype),
            in_specs=[pl.BlockSpec(memory_space=pltpu.MemorySpace.VMEM)] * n_in,
            out_specs=pl.BlockSpec(memory_space=pltpu.MemorySpace.VMEM),
            compiler_params=pltpu.CompilerParams(vmem_limit_bytes=vmem),
        )(x_pad, *flat_params)
    else:
        # ---- tiled path: grid over 512-row batch tiles; weights pinned in VMEM via
        #      constant index_map; even tile count balances v7x's two TensorCores ----
        n_tiles = _round_up(pl.cdiv(B, BATCH_TILE), 2)
        b_pad = n_tiles * BATCH_TILE
        x_pad = jnp.zeros((b_pad, din), compute_dtype).at[:B, :].set(
            x.astype(compute_dtype))
        in_specs = [pl.BlockSpec((BATCH_TILE, din), lambda i: (i, 0))]
        for p in flat_params:
            # TODO(synk): pipeline_mode=pl.Buffered(1) would single-buffer these constant
            # blocks; left at the default for maximally portable lowering (the weights
            # here are tiny, so the extra buffer is negligible).
            in_specs.append(pl.BlockSpec(p.shape, lambda i: (0, 0)))
        vmem = _vmem_limit_bytes(flat_params, BATCH_TILE, din, out_dim, widest_pad)
        y_pad = pl.pallas_call(
            kernel,
            out_shape=jax.ShapeDtypeStruct((b_pad, out_dim), out_dtype),
            grid_spec=pl.GridSpec(
                grid=(n_tiles,),
                in_specs=in_specs,
                out_specs=pl.BlockSpec((BATCH_TILE, out_dim), lambda i: (i, 0)),
            ),
            compiler_params=pltpu.CompilerParams(
                dimension_semantics=("parallel",),  # 2 TCs on v7x; harmless elsewhere
                vmem_limit_bytes=vmem,
            ),
        )(x_pad, *flat_params)

    return y_pad[:B, :]


class NeuralNetPallas:
    """JAX/Pallas mirror of the PyTorch NeuralNet module (single fused forward kernel)."""

    def __init__(self, input_dim, output_dim, hidden_dims=(), key=None,
                 compute_dtype=None):
        layer_dims = [input_dim] + list(hidden_dims) + [output_dim]
        self.num_layers = len(layer_dims) - 1
        self.input_dim = input_dim
        self.output_dim = output_dim
        self.compute_dtype = compute_dtype if compute_dtype is not None else \
            _default_compute_dtype()
        if key is None:
            key = jax.random.PRNGKey(0)

        self.params = []        # unpadded f32 params (reference numerics)
        flat = []               # kernel params: weights in compute dtype, biases f32
        widest = input_dim
        for i in range(self.num_layers):
            key, kw, kb = jax.random.split(key, 3)
            fan_in, fan_out = layer_dims[i], layer_dims[i + 1]
            bound = float(fan_in) ** -0.5  # ~ torch Linear default scale, deterministic
            # Stored already transposed: [in, out]
            w = jax.random.uniform(kw, (fan_in, fan_out), jnp.float32, -bound, bound)
            b = jax.random.uniform(kb, (1, fan_out), jnp.float32, -bound, bound)
            self.params.append((w, b))

            # Pad only hidden widths to 128 lanes; keep the true Din on layer 0's
            # input side and the true output_dim on the last layer's output side.
            in_pad = fan_in if i == 0 else _round_up(fan_in, LANE)
            out_pad = fan_out if i == self.num_layers - 1 else _round_up(fan_out, LANE)
            widest = max(widest, out_pad)

            w_pad = jnp.zeros((in_pad, out_pad), self.compute_dtype)
            w_pad = w_pad.at[:fan_in, :fan_out].set(w.astype(self.compute_dtype))
            b_pad = jnp.zeros((1, out_pad), jnp.float32).at[:, :fan_out].set(b)
            flat += [w_pad, b_pad]

        self._flat_params = flat
        self._widest_pad = widest

        # One jit over the whole forward: pad, pallas_call and the final un-pad slice
        # compile into a single executable (no eager HBM round-trips in between).
        self._jit_forward = jax.jit(functools.partial(
            _forward,
            num_layers=self.num_layers,
            out_dim=self.output_dim,
            compute_dtype=self.compute_dtype,
            widest_pad=self._widest_pad,
        ))

    def __call__(self, x):
        assert x.shape[1] == self.input_dim
        return self._jit_forward(x, self._flat_params)

    def reference(self, x):
        """Plain-JAX f32 reference using the unpadded params (same op order)."""
        h = jnp.asarray(x, jnp.float32)
        for w, b in self.params:
            h = jnp.maximum(h @ w + b, 0.0)
        return h


if __name__ == "__main__":
    key = jax.random.PRNGKey(0)
    k_small, k_big, k_param = jax.random.split(key, 3)

    batch = 2
    input_dim = 16
    hidden_dims = [32, 32]
    output_dim = 8

    net = NeuralNetPallas(input_dim, output_dim, hidden_dims, key=k_param)

    if net.compute_dtype == jnp.bfloat16:
        atol = rtol = 5e-2   # bf16 matmuls (v6e / v7x), f32 accumulation
    else:
        atol = rtol = 1e-5   # pure f32 (v5e and others)

    # --- Small-batch path (single fused kernel, no grid, bucketed batch pad) -----
    x = jax.random.normal(k_small, (batch, input_dim), dtype=jnp.float32)
    out = jax.block_until_ready(net(x))
    ref = net.reference(x)
    assert out.shape == (batch, output_dim)
    assert jnp.allclose(out, ref, atol=atol, rtol=rtol), \
        float(jnp.max(jnp.abs(out - ref)))

    # --- Large-batch path (512-row batch tiles, parallel semantics, even tiles) --
    big_batch = 1100  # cdiv(1100, 512) = 3 tiles -> rounded up to 4 (megacore balance)
    x_big = jax.random.normal(k_big, (big_batch, input_dim), dtype=jnp.float32)
    out_big = jax.block_until_ready(net(x_big))
    ref_big = net.reference(x_big)
    assert out_big.shape == (big_batch, output_dim)
    assert jnp.allclose(out_big, ref_big, atol=atol, rtol=rtol), \
        float(jnp.max(jnp.abs(out_big - ref_big)))

    print("KERNEL_OK")
</pallas_src>

<mosaic_0001>
module attributes {stable_mosaic.version = 11 : i64} {
  func.func @kernel(%arg0: memref<8x16xf32, #tpu.memory_space<vmem>>, %arg1: memref<16x128xf32, #tpu.memory_space<vmem>>, %arg2: memref<1x128xf32, #tpu.memory_space<vmem>>, %arg3: memref<128x128xf32, #tpu.memory_space<vmem>>, %arg4: memref<1x128xf32, #tpu.memory_space<vmem>>, %arg5: memref<128x8xf32, #tpu.memory_space<vmem>>, %arg6: memref<1x8xf32, #tpu.memory_space<vmem>>, %arg7: memref<8x8xf32, #tpu.memory_space<vmem>>) attributes {dimension_semantics = [], scalar_prefetch = 0 : i64, scratch_operands = 0 : i64, tpu.core_type = #tpu.core_type<tc>} {
    %c0 = arith.constant 0 : index
    %c0_0 = arith.constant 0 : index
    %0 = vector.load %arg0[%c0, %c0_0] : memref<8x16xf32, #tpu.memory_space<vmem>>, vector<8x16xf32>
    %c0_1 = arith.constant 0 : index
    %c0_2 = arith.constant 0 : index
    %1 = vector.load %arg1[%c0_1, %c0_2] : memref<16x128xf32, #tpu.memory_space<vmem>>, vector<16x128xf32>
    %cst = arith.constant dense<0.000000e+00> : vector<8x128xf32>
    %2 = tpu.matmul %0, %1, %cst {dimension_numbers = #tpu.dot_dimension_numbers<[1], [0], [0], [1], [0, 0, 1, 1], [], []>} : vector<8x16xf32>, vector<16x128xf32>, vector<8x128xf32> -> vector<8x128xf32>
    %c0_3 = arith.constant 0 : index
    %c0_4 = arith.constant 0 : index
    %3 = vector.load %arg2[%c0_3, %c0_4] : memref<1x128xf32, #tpu.memory_space<vmem>>, vector<1x128xf32>
    %4 = vector.broadcast %3 : vector<1x128xf32> to vector<8x128xf32>
    %5 = arith.addf %2, %4 : vector<8x128xf32>
    %cst_5 = arith.constant 0.000000e+00 : f32
    %6 = vector.broadcast %cst_5 : f32 to vector<8x128xf32>
    %7 = arith.maximumf %5, %6 : vector<8x128xf32>
    %c0_6 = arith.constant 0 : index
    %c0_7 = arith.constant 0 : index
    %8 = vector.load %arg3[%c0_6, %c0_7] : memref<128x128xf32, #tpu.memory_space<vmem>>, vector<128x128xf32>
    %cst_8 = arith.constant dense<0.000000e+00> : vector<8x128xf32>
    %9 = tpu.matmul %7, %8, %cst_8 {dimension_numbers = #tpu.dot_dimension_numbers<[1], [0], [0], [1], [0, 0, 1, 1], [], []>} : vector<8x128xf32>, vector<128x128xf32>, vector<8x128xf32> -> vector<8x128xf32>
    %c0_9 = arith.constant 0 : index
    %c0_10 = arith.constant 0 : index
    %10 = vector.load %arg4[%c0_9, %c0_10] : memref<1x128xf32, #tpu.memory_space<vmem>>, vector<1x128xf32>
    %11 = vector.broadcast %10 : vector<1x128xf32> to vector<8x128xf32>
    %12 = arith.addf %9, %11 : vector<8x128xf32>
    %cst_11 = arith.constant 0.000000e+00 : f32
    %13 = vector.broadcast %cst_11 : f32 to vector<8x128xf32>
    %14 = arith.maximumf %12, %13 : vector<8x128xf32>
    %c0_12 = arith.constant 0 : index
    %c0_13 = arith.constant 0 : index
    %15 = vector.load %arg5[%c0_12, %c0_13] : memref<128x8xf32, #tpu.memory_space<vmem>>, vector<128x8xf32>
    %cst_14 = arith.constant dense<0.000000e+00> : vector<8x8xf32>
    %16 = tpu.matmul %14, %15, %cst_14 {dimension_numbers = #tpu.dot_dimension_numbers<[1], [0], [0], [1], [0, 0, 1, 1], [], []>} : vector<8x128xf32>, vector<128x8xf32>, vector<8x8xf32> -> vector<8x8xf32>
    %c0_15 = arith.constant 0 : index
    %c0_16 = arith.constant 0 : index
    %17 = vector.load %arg6[%c0_15, %c0_16] : memref<1x8xf32, #tpu.memory_space<vmem>>, vector<1x8xf32>
    %18 = vector.broadcast %17 : vector<1x8xf32> to vector<8x8xf32>
    %19 = arith.addf %16, %18 : vector<8x8xf32>
    %cst_17 = arith.constant 0.000000e+00 : f32
    %20 = vector.broadcast %cst_17 : f32 to vector<8x8xf32>
    %21 = arith.maximumf %19, %20 : vector<8x8xf32>
    %c0_18 = arith.constant 0 : index
    %c0_19 = arith.constant 0 : index
    %22 = vector.load %arg7[%c0_18, %c0_19] : memref<8x8xf32, #tpu.memory_space<vmem>>, vector<8x8xf32>
    tpu.vector_store %arg7[%c0_18, %c0_19], %21 {strides = array<i32>} : memref<8x8xf32, #tpu.memory_space<vmem>>, vector<8x8xf32>,
    return
  }
}

</mosaic_0001>

<llo_original>
// kernel: _forward.1
$region0: #{_forward.1}
  #allocation0 [shape = 'u32[]', space=smem, size = 0x4, offset = 0x4, fixed_abs, tag = 'smem constant byte address 0x4 - core index']
  #allocation1 [shape = 'u32[144,128]{1,0:T(1,128)}', space=vmem, size = 0x12000, scoped, tag = 'internal scratch']
  %s0 = inlined_call_operand.vmem [shape: f32[8,16], index: 0, kind: input, shape index: {}]
  %s1 = inlined_call_operand.vmem [shape: f32[16,128], index: 1, kind: input, shape index: {}]
  %s2 = inlined_call_operand.vmem [shape: f32[1,128], index: 2, kind: input, shape index: {}]
  %s3 = inlined_call_operand.vmem [shape: f32[128,128], index: 3, kind: input, shape index: {}]
  %s4 = inlined_call_operand.vmem [shape: f32[1,128], index: 4, kind: input, shape index: {}]
  %s5 = inlined_call_operand.vmem [shape: f32[128,8], index: 5, kind: input, shape index: {}]
  %s6 = inlined_call_operand.vmem [shape: f32[1,8], index: 6, kind: input, shape index: {}]
  %s7 = inlined_call_operand.vmem [shape: f32[8,8], index: 7, kind: output, shape index: {}]
  %s8 = sld [smem:[#allocation0]]
  $region38: #{_forward.1} parent=0
    _
  %s10 = ssub.s32 1, %s8
  %s11 = scalar_select 0, %s10, %s8
  // Predicated region
  $region2: #{_forward.1} parent=0 // pred_check
    _
  $region3: #{_forward.1} parent=0 // pred_check_branch
    %13 = sbr.rel (0) target = $region5
  $region4: #{_forward.1} parent=0 // pred_region
    _
  $region5: #{_forward.1} parent=0 // pred_fallthru
    _
  // Predicated region
  $region6: #{_forward.1} parent=0 // pred_check
    _
  $region7: #{_forward.1} parent=0 // pred_check_branch
    %15 = sbr.rel (0) target = $region9
  $region8: #{_forward.1} parent=0 // pred_region
    _
  $region9: #{_forward.1} parent=0 // pred_fallthru
    _
  // Predicated region
  $region10: #{_forward.1} parent=0 // pred_check
    _
  $region11: #{_forward.1} parent=0 // pred_check_branch
    %17 = sbr.rel (0) target = $region13
  $region12: #{_forward.1} parent=0 // pred_region
    _
  $region13: #{_forward.1} parent=0 // pred_fallthru
    _
  // Predicated region
  $region14: #{_forward.1} parent=0 // pred_check
    _
  $region15: #{_forward.1} parent=0 // pred_check_branch
    %19 = sbr.rel (0) target = $region17
  $region16: #{_forward.1} parent=0 // pred_region
    _
  $region17: #{_forward.1} parent=0 // pred_fallthru
    _
  // Predicated region
  $region18: #{_forward.1} parent=0 // pred_check
    _
  $region19: #{_forward.1} parent=0 // pred_check_branch
    %21 = sbr.rel (0) target = $region21
  $region20: #{_forward.1} parent=0 // pred_region
    _
  $region21: #{_forward.1} parent=0 // pred_fallthru
    _
  // Predicated region
  $region22: #{_forward.1} parent=0 // pred_check
    _
  $region23: #{_forward.1} parent=0 // pred_check_branch
    %23 = sbr.rel (0) target = $region25
  $region24: #{_forward.1} parent=0 // pred_region
    _
  $region25: #{_forward.1} parent=0 // pred_fallthru
    _
  // Predicated region
  $region26: #{_forward.1} parent=0 // pred_check
    _
  $region27: #{_forward.1} parent=0 // pred_check_branch
    %25 = sbr.rel (0) target = $region29
  $region28: #{_forward.1} parent=0 // pred_region
    _
  $region29: #{_forward.1} parent=0 // pred_fallthru
    _
  %v26 = vld [vmem:[%s0] sm:$0xff]
  %v27 = vld [vmem:[%s1] sm:$0xff]
  %v28 = vld [vmem:[%s1 + $0x8] sm:$0xff]
  %v29 = vld [vmem:[%s2] sm:$0x1]
  %v31 = vlaneseq
  %v32 = vshrl.u32 %v31, 7
  %v33 = vsub.s32 0, %v32
  %v34 = vrot.slane %v29, %v33
  %vm36 = vcmask 130048
  %v38 = vsel %vm36, %v26, 0
  %40 = vmatprep.subr.mxu0 0.0
  %41 = vmatpush1.msra.mxu0 %v27
  %42 = vmatprep.subr.mxu0 0.0
  %43 = vmatpush1.msra.mxu0 %v28
  %44 = vmatprep.subr.mxu0 0.0
  %45 = vmatpush1.msra.mxu0 0.0
  %46 = vmatprep.subr.mxu0 0.0
  %47 = vmatpush1.msra.mxu0 0.0
  %48 = vmatprep.subr.mxu0 0.0
  %49 = vmatpush1.msra.mxu0 0.0
  %50 = vmatprep.subr.mxu0 0.0
  %51 = vmatpush1.msra.mxu0 0.0
  %52 = vmatprep.subr.mxu0 0.0
  %53 = vmatpush1.msra.mxu0 0.0
  %54 = vmatprep.subr.mxu0 0.0
  %55 = vmatpush1.msra.mxu0 0.0
  %56 = vmatprep.subr.mxu0 0.0
  %57 = vmatpush1.msra.mxu0 0.0
  %58 = vmatprep.subr.mxu0 0.0
  %59 = vmatpush1.msra.mxu0 0.0
  %60 = vmatprep.subr.mxu0 0.0
  %61 = vmatpush1.msra.mxu0 0.0
  %62 = vmatprep.subr.mxu0 0.0
  %63 = vmatpush1.msra.mxu0 0.0
  %64 = vmatprep.subr.mxu0 0.0
  %65 = vmatpush1.msra.mxu0 0.0
  %66 = vmatprep.subr.mxu0 0.0
  %67 = vmatpush1.msra.mxu0 0.0
  %68 = vmatprep.subr.mxu0 0.0
  %69 = vmatpush1.msra.mxu0 0.0
  %70 = vmatprep.subr.mxu0 0.0
  %71 = vmatpush1.msra.mxu0 0.0
  %72 = vmatprep.subr.mxu0 0.0
  %73 = vmatpush1.msra.mxu0 0.0
  %74 = vmatprep.subr.mxu0 0.0
  %75 = vmatpush1.msra.mxu0 0.0
  %76 = vmatprep.subr.mxu0 0.0
  %77 = vmatpush1.msra.mxu0 0.0
  %78 = vmatprep.subr.mxu0 0.0
  %79 = vmatpush1.msra.mxu0 0.0
  %80 = vmatprep.subr.mxu0 0.0
  %81 = vmatpush1.msra.mxu0 0.0
  %82 = vmatprep.subr.mxu0 0.0
  %83 = vmatpush1.msra.mxu0 0.0
  %84 = vmatprep.subr.mxu0 0.0
  %85 = vmatpush1.msra.mxu0 0.0
  %86 = vmatprep.subr.mxu0 0.0
  %87 = vmatpush1.msra.mxu0 0.0
  %88 = vmatprep.subr.mxu0 0.0
  %89 = vmatpush1.msra.mxu0 0.0
  %90 = vmatprep.subr.mxu0 0.0
  %91 = vmatpush1.msra.mxu0 0.0
  %92 = vmatprep.subr.mxu0 0.0
  %93 = vmatpush1.msra.mxu0 0.0
  %94 = vmatprep.subr.mxu0 0.0
  %95 = vmatpush1.msra.mxu0 0.0
  %96 = vmatprep.subr.mxu0 0.0
  %97 = vmatpush1.msra.mxu0 0.0
  %98 = vmatprep.subr.mxu0 0.0
  %99 = vmatpush1.msra.mxu0 0.0
  %100 = vmatprep.subr.mxu0 0.0
  %101 = vmatpush1.msra.mxu0 0.0
  %102 = vmatprep.subr.mxu0 0.0
  %103 = vmatpush1.msra.mxu0 0.0
  %104 = vmatprep.mubr.f32.mxu0 0.0
  %105 = vmatmul.mubr.f32.gmra.mrb[0].mxu0 %v38
  %v106 = vpop.f32.mrb[0].mxu0
  %v107 = vadd.f32 %v34, %v106
  %v108 = vpop.f32.mrb[0].mxu0
  %109 = vdwg.mxu0
  %v110 = vmax.f32 %v107, 0.0
  %v111 = vld [vmem:[%s3] sm:$0xff]
  %v112 = vld [vmem:[%s3 + $0x8] sm:$0xff]
  %v113 = vld [vmem:[%s3 + $0x10] sm:$0xff]
  %v114 = vld [vmem:[%s3 + $0x18] sm:$0xff]
  %v115 = vld [vmem:[%s3 + $0x20] sm:$0xff]
  %v116 = vld [vmem:[%s3 + $0x28] sm:$0xff]
  %v117 = vld [vmem:[%s3 + $0x30] sm:$0xff]
  %v118 = vld [vmem:[%s3 + $0x38] sm:$0xff]
  %v119 = vld [vmem:[%s3 + $0x40] sm:$0xff]
  %v120 = vld [vmem:[%s3 + $0x48] sm:$0xff]
  %v121 = vld [vmem:[%s3 + $0x50] sm:$0xff]
  %v122 = vld [vmem:[%s3 + $0x58] sm:$0xff]
  %v123 = vld [vmem:[%s3 + $0x60] sm:$0xff]
  %v124 = vld [vmem:[%s3 + $0x68] sm:$0xff]
  %v125 = vld [vmem:[%s3 + $0x70] sm:$0xff]
  %v126 = vld [vmem:[%s3 + $0x78] sm:$0xff]
  %v127 = vld [vmem:[%s4] sm:$0x1]
  %v129 = vlaneseq
  %v130 = vshrl.u32 %v129, 7
  %v131 = vsub.s32 0, %v130
  %v132 = vrot.slane %v127, %v131
  %134 = vmatprep.subr.mxu0 0.0
  %135 = vmatpush1.msra.mxu0 %v111
  %136 = vmatprep.subr.mxu0 0.0
  %137 = vmatpush1.msra.mxu0 %v112
  %138 = vmatprep.subr.mxu0 0.0
  %139 = vmatpush1.msra.mxu0 %v113
  %140 = vmatprep.subr.mxu0 0.0
  %141 = vmatpush1.msra.mxu0 %v114
  %142 = vmatprep.subr.mxu0 0.0
  %143 = vmatpush1.msra.mxu0 %v115
  %144 = vmatprep.subr.mxu0 0.0
  %145 = vmatpush1.msra.mxu0 %v116
  %146 = vmatprep.subr.mxu0 0.0
  %147 = vmatpush1.msra.mxu0 %v117
  %148 = vmatprep.subr.mxu0 0.0
  %149 = vmatpush1.msra.mxu0 %v118
  %150 = vmatprep.subr.mxu0 0.0
  %151 = vmatpush1.msra.mxu0 %v119
  %152 = vmatprep.subr.mxu0 0.0
  %153 = vmatpush1.msra.mxu0 %v120
  %154 = vmatprep.subr.mxu0 0.0
  %155 = vmatpush1.msra.mxu0 %v121
  %156 = vmatprep.subr.mxu0 0.0
  %157 = vmatpush1.msra.mxu0 %v122
  %158 = vmatprep.subr.mxu0 0.0
  %159 = vmatpush1.msra.mxu0 %v123
  %160 = vmatprep.subr.mxu0 0.0
  %161 = vmatpush1.msra.mxu0 %v124
  %162 = vmatprep.subr.mxu0 0.0
  %163 = vmatpush1.msra.mxu0 %v125
  %164 = vmatprep.subr.mxu0 0.0
  %165 = vmatpush1.msra.mxu0 %v126
  %166 = vmatprep.subr.mxu0 0.0
  %167 = vmatpush1.msra.mxu0 0.0
  %168 = vmatprep.subr.mxu0 0.0
  %169 = vmatpush1.msra.mxu0 0.0
  %170 = vmatprep.subr.mxu0 0.0
  %171 = vmatpush1.msra.mxu0 0.0
  %172 = vmatprep.subr.mxu0 0.0
  %173 = vmatpush1.msra.mxu0 0.0
  %174 = vmatprep.subr.mxu0 0.0
  %175 = vmatpush1.msra.mxu0 0.0
  %176 = vmatprep.subr.mxu0 0.0
  %177 = vmatpush1.msra.mxu0 0.0
  %178 = vmatprep.subr.mxu0 0.0
  %179 = vmatpush1.msra.mxu0 0.0
  %180 = vmatprep.subr.mxu0 0.0
  %181 = vmatpush1.msra.mxu0 0.0
  %182 = vmatprep.subr.mxu0 0.0
  %183 = vmatpush1.msra.mxu0 0.0
  %184 = vmatprep.subr.mxu0 0.0
  %185 = vmatpush1.msra.mxu0 0.0
  %186 = vmatprep.subr.mxu0 0.0
  %187 = vmatpush1.msra.mxu0 0.0
  %188 = vmatprep.subr.mxu0 0.0
  %189 = vmatpush1.msra.mxu0 0.0
  %190 = vmatprep.subr.mxu0 0.0
  %191 = vmatpush1.msra.mxu0 0.0
  %192 = vmatprep.subr.mxu0 0.0
  %193 = vmatpush1.msra.mxu0 0.0
  %194 = vmatprep.subr.mxu0 0.0
  %195 = vmatpush1.msra.mxu0 0.0
  %196 = vmatprep.subr.mxu0 0.0
  %197 = vmatpush1.msra.mxu0 0.0
  %198 = vmatprep.mubr.f32.mxu0 0.0
  %199 = vmatmul.mubr.f32.gmra.mrb[0].mxu0 %v110
  %v200 = vpop.f32.mrb[0].mxu0
  %v201 = vadd.f32 %v132, %v200
  %v202 = vpop.f32.mrb[0].mxu0
  %203 = vdwg.mxu0
  %v204 = vmax.f32 %v201, 0.0
  %v205 = vld [vmem:[%s5] sm:$0xff]
  %v206 = vld [vmem:[%s5 + $0x8] sm:$0xff]
  %v207 = vld [vmem:[%s5 + $0x10] sm:$0xff]
  %v208 = vld [vmem:[%s5 + $0x18] sm:$0xff]
  %v209 = vld [vmem:[%s5 + $0x20] sm:$0xff]
  %v210 = vld [vmem:[%s5 + $0x28] sm:$0xff]
  %v211 = vld [vmem:[%s5 + $0x30] sm:$0xff]
  %v212 = vld [vmem:[%s5 + $0x38] sm:$0xff]
  %v213 = vld [vmem:[%s5 + $0x40] sm:$0xff]
  %v214 = vld [vmem:[%s5 + $0x48] sm:$0xff]
  %v215 = vld [vmem:[%s5 + $0x50] sm:$0xff]
  %v216 = vld [vmem:[%s5 + $0x58] sm:$0xff]
  %v217 = vld [vmem:[%s5 + $0x60] sm:$0xff]
  %v218 = vld [vmem:[%s5 + $0x68] sm:$0xff]
  %v219 = vld [vmem:[%s5 + $0x70] sm:$0xff]
  %v220 = vld [vmem:[%s5 + $0x78] sm:$0xff]
  %v221 = vld [vmem:[%s6] sm:$0x1]
  %v223 = vlaneseq
  %v224 = vshrl.u32 %v223, 7
  %v225 = vsub.s32 0, %v224
  %v226 = vrot.slane %v221, %v225
  %228 = vmatprep.subr.mxu0 0.0
  %229 = vmatpush1.msra.mxu0 %v205
  %230 = vmatprep.subr.mxu0 0.0
  %231 = vmatpush1.msra.mxu0 %v206
  %232 = vmatprep.subr.mxu0 0.0
  %233 = vmatpush1.msra.mxu0 %v207
  %234 = vmatprep.subr.mxu0 0.0
  %235 = vmatpush1.msra.mxu0 %v208
  %236 = vmatprep.subr.mxu0 0.0
  %237 = vmatpush1.msra.mxu0 %v209
  %238 = vmatprep.subr.mxu0 0.0
  %239 = vmatpush1.msra.mxu0 %v210
  %240 = vmatprep.subr.mxu0 0.0
  %241 = vmatpush1.msra.mxu0 %v211
  %242 = vmatprep.subr.mxu0 0.0
  %243 = vmatpush1.msra.mxu0 %v212
  %244 = vmatprep.subr.mxu0 0.0
  %245 = vmatpush1.msra.mxu0 %v213
  %246 = vmatprep.subr.mxu0 0.0
  %247 = vmatpush1.msra.mxu0 %v214
  %248 = vmatprep.subr.mxu0 0.0
  %249 = vmatpush1.msra.mxu0 %v215
  %250 = vmatprep.subr.mxu0 0.0
  %251 = vmatpush1.msra.mxu0 %v216
  %252 = vmatprep.subr.mxu0 0.0
  %253 = vmatpush1.msra.mxu0 %v217
  %254 = vmatprep.subr.mxu0 0.0
  %255 = vmatpush1.msra.mxu0 %v218
  %256 = vmatprep.subr.mxu0 0.0
  %257 = vmatpush1.msra.mxu0 %v219
  %258 = vmatprep.subr.mxu0 0.0
  %259 = vmatpush1.msra.mxu0 %v220
  %260 = vmatprep.subr.mxu0 0.0
  %261 = vmatpush1.msra.mxu0 0.0
  %262 = vmatprep.subr.mxu0 0.0
  %263 = vmatpush1.msra.mxu0 0.0
  %264 = vmatprep.subr.mxu0 0.0
  %265 = vmatpush1.msra.mxu0 0.0
  %266 = vmatprep.subr.mxu0 0.0
  %267 = vmatpush1.msra.mxu0 0.0
  %268 = vmatprep.subr.mxu0 0.0
  %269 = vmatpush1.msra.mxu0 0.0
  %270 = vmatprep.subr.mxu0 0.0
  %271 = vmatpush1.msra.mxu0 0.0
  %272 = vmatprep.subr.mxu0 0.0
  %273 = vmatpush1.msra.mxu0 0.0
  %274 = vmatprep.subr.mxu0 0.0
  %275 = vmatpush1.msra.mxu0 0.0
  %276 = vmatprep.subr.mxu0 0.0
  %277 = vmatpush1.msra.mxu0 0.0
  %278 = vmatprep.subr.mxu0 0.0
  %279 = vmatpush1.msra.mxu0 0.0
  %280 = vmatprep.subr.mxu0 0.0
  %281 = vmatpush1.msra.mxu0 0.0
  %282 = vmatprep.subr.mxu0 0.0
  %283 = vmatpush1.msra.mxu0 0.0
  %284 = vmatprep.subr.mxu0 0.0
  %285 = vmatpush1.msra.mxu0 0.0
  %286 = vmatprep.subr.mxu0 0.0
  %287 = vmatpush1.msra.mxu0 0.0
  %288 = vmatprep.subr.mxu0 0.0
  %289 = vmatpush1.msra.mxu0 0.0
  %290 = vmatprep.subr.mxu0 0.0
  %291 = vmatpush1.msra.mxu0 0.0
  %292 = vmatprep.mubr.f32.mxu0 0.0
  %293 = vmatmul.mubr.f32.gmra.mrb[0].mxu0 %v204
  %v294 = vpop.f32.mrb[0].mxu0
  %v295 = vadd.f32 %v226, %v294
  %v296 = vpop.f32.mrb[0].mxu0
  %297 = vdwg.mxu0
  %v298 = vmax.f32 %v295, 0.0
  %vm299 = vcmask 64512
  %300 = vst.msk [vmem:[%s7] sm:$0xff] %vm299, %v298
  // Predicated region
  $region30: #{_forward.1} parent=0 // pred_check
    _
  $region31: #{_forward.1} parent=0 // pred_check_branch
    %302 = sbr.rel (0) target = $region33
  $region32: #{_forward.1} parent=0 // pred_region
    _
  $region33: #{_forward.1} parent=0 // pred_fallthru
    _
  // Predicated region
  $region34: #{_forward.1} parent=0 // pred_check
    _
  $region35: #{_forward.1} parent=0 // pred_check_branch
    %304 = sbr.rel (0) target = $region37
  $region36: #{_forward.1} parent=0 // pred_region
    _
  $region37: #{_forward.1} parent=0 // pred_fallthru
    _

</llo_original>
